<compile_context>
chip_gen: v7x
topology: tpu7x:2x2x1
jax: 0.10.0
libtpu: 0.0.40
codegen_flags: <defaults>
</compile_context>

<pallas_src>
import jax
import jax.numpy as jnp
from jax.experimental import pallas as pl
from jax.experimental.pallas import tpu as pltpu


TB = 128  # samples per grid step (one full lane width)


# params (SMEM, f32[16]):
#   [0:6]   W[0, :]   (first output row of nn.Linear(6,2).weight)
#   [6:12]  W[1, :]
#   [12:14] bias
#   [14:16] c (the module-level (2,1) constant, flattened)
#
# x block (VMEM, f32[6, TB]): row r holds flattened-x element r for TB samples
#   rows: x00, x01, x10, x11, x20, x21   (i.e. x.view(3,2) row-major)
def _center_kernel(params_ref, x_ref, out_ref, loss_ref):
    x = x_ref[...]                              # (6, TB) — single full load
    x0 = x[0:1, :]; x1 = x[1:2, :]
    x2 = x[2:3, :]; x3 = x[3:4, :]
    x4 = x[4:5, :]; x5 = x[5:6, :]

    p = params_ref
    # Linear(6, 2): out = x_flat @ W.T + b  -> 12 scalar*vector MACs (VPU only).
    cx = (p[0] * x0 + p[1] * x1 + p[2] * x2
          + p[3] * x3 + p[4] * x4 + p[5] * x5) + p[12]     # (1, TB)
    cy = (p[6] * x0 + p[7] * x1 + p[8] * x2
          + p[9] * x3 + p[10] * x4 + p[11] * x5) + p[13]   # (1, TB)

    # Circle loss: std (unbiased) of distances node_k -> predicted center.
    c0 = p[14]
    c1 = p[15]
    dx0 = x0 - cx; dy0 = x1 - cy
    dx1 = x2 - cx; dy1 = x3 - cy
    dx2 = x4 - cx; dy2 = x5 - cy
    # torch.mm(sq, c) with c a (2,1) column == c0*dx^2 + c1*dy^2 per node.
    d2a = c0 * dx0 * dx0 + c1 * dy0 * dy0
    d2b = c0 * dx1 * dx1 + c1 * dy1 * dy1
    d2c = c0 * dx2 * dx2 + c1 * dy2 * dy2
    da = jnp.sqrt(d2a)                          # EUP
    db = jnp.sqrt(d2b)
    dc = jnp.sqrt(d2c)

    mean = (da + db + dc) * (1.0 / 3.0)
    ea = da - mean; eb = db - mean; ec = dc - mean
    var = (ea * ea + eb * eb + ec * ec) * 0.5   # ddof=1: /(3-1)
    loss_ref[...] = jnp.sqrt(var)               # (1, TB), one unmasked store

    out_ref[...] = jnp.concatenate([cx, cy], axis=0)   # (2, TB), one store


def pack_params(w, b, c):
    """Pack Linear weight (2,6), bias (2,), and constant c (2,1) into f32[16].

    Call this ONCE (outside the per-step path) — the parameters are constant
    across calls.
    """
    w = jnp.asarray(w, jnp.float32).reshape(-1)   # (12,) row-major: W[0,:], W[1,:]
    b = jnp.asarray(b, jnp.float32).reshape(-1)   # (2,)
    c = jnp.asarray(c, jnp.float32).reshape(-1)   # (2,)
    return jnp.concatenate([w, b, c])             # (16,)


def center_of_circle_batch(params, x_batch, tb=TB):
    """Batched forward: x_batch (B, 3, 2) -> (out (B, 2), loss (B,))."""
    x_batch = jnp.asarray(x_batch, jnp.float32)
    B = x_batch.shape[0]
    X = x_batch.reshape(B, 6).T                   # (6, B): features x samples
    b_pad = pl.cdiv(B, tb) * tb
    if b_pad != B:
        X = jnp.pad(X, ((0, 0), (0, b_pad - B)))
    nblk = b_pad // tb

    out2, loss1 = pl.pallas_call(
        _center_kernel,
        grid=(nblk,),
        in_specs=[
            pl.BlockSpec(memory_space=pltpu.MemorySpace.SMEM),   # params (whole)
            pl.BlockSpec((6, tb), lambda i: (0, i)),             # x block
        ],
        out_specs=[
            pl.BlockSpec((2, tb), lambda i: (0, i)),             # centers
            pl.BlockSpec((1, tb), lambda i: (0, i)),             # loss
        ],
        out_shape=[
            jax.ShapeDtypeStruct((2, b_pad), jnp.float32),
            jax.ShapeDtypeStruct((1, b_pad), jnp.float32),
        ],
        compiler_params=pltpu.CompilerParams(
            dimension_semantics=("parallel",)),                  # v7x: 2 TCs
    )(params, X)

    return out2[:, :B].T, loss1[0, :B]


def center_of_circle(x, w, b, c):
    """Single-sample forward matching the original module:
    x (3,2) [== x.view(3,2)], w (2,6), b (2,), c (2,1) -> (out (1,2), loss scalar)."""
    params = pack_params(w, b, c)
    out, loss = center_of_circle_batch(params, jnp.asarray(x).reshape(1, 3, 2))
    return out.reshape(1, 2), loss[0]


def reference(x, w, b, c):
    """Pure-JAX mirror of the PyTorch forward for a single sample."""
    x_row = x.reshape(1, 6)
    out = x_row @ w.T + b.reshape(1, 2)
    node = x.reshape(3, 2)
    diff = node - out
    d = jnp.sqrt((diff * diff) @ c)               # (3, 1)
    loss = jnp.std(d, ddof=1)                     # torch.std default: unbiased
    return out.reshape(2), loss


if __name__ == "__main__":
    key = jax.random.PRNGKey(0)
    kx, kw, kb = jax.random.split(key, 3)

    # Batch of problem instances; each x views to (1,6) / (3,2) as in the module.
    B = 256
    x_batch = jax.random.normal(kx, (B, 3, 2), dtype=jnp.float32)

    # deterministic nn.Linear(6, 2)-style init: U(-1/sqrt(6), 1/sqrt(6))
    bound = float(1.0 / jnp.sqrt(6.0))
    w = jax.random.uniform(kw, (2, 6), jnp.float32, -bound, bound)
    b = jax.random.uniform(kb, (2,), jnp.float32, -bound, bound)

    # the module's global `c`: sums squared dx,dy -> squared distance
    c = jnp.ones((2, 1), jnp.float32)

    # Parameters packed once, outside the per-call path.
    params = pack_params(w, b, c)

    # Batched kernel call (the high-value path).
    out_b, loss_b = center_of_circle_batch(params, x_batch)
    jax.block_until_ready((out_b, loss_b))

    ref_out, ref_loss = jax.vmap(lambda xi: reference(xi, w, b, c))(x_batch)
    assert jnp.allclose(out_b, ref_out, atol=1e-5), (out_b[:2], ref_out[:2])
    assert jnp.allclose(loss_b, ref_loss, atol=1e-5), (loss_b[:4], ref_loss[:4])

    # Single-sample path matching the original module's forward signature.
    out1, loss1 = center_of_circle(x_batch[0], w, b, c)
    jax.block_until_ready((out1, loss1))
    r_out, r_loss = reference(x_batch[0], w, b, c)
    assert jnp.allclose(out1, r_out.reshape(1, 2), atol=1e-5), (out1, r_out)
    assert jnp.allclose(loss1, r_loss, atol=1e-5), (loss1, r_loss)

    print("KERNEL_OK")
</pallas_src>

<mosaic_0001>
module attributes {stable_mosaic.version = 11 : i64} {
  func.func @_center_kernel(%arg0: i32, %arg1: memref<16xf32, #tpu.memory_space<smem>>, %arg2: memref<6x128xf32, #tpu.memory_space<vmem>>, %arg3: memref<2x128xf32, #tpu.memory_space<vmem>>, %arg4: memref<1x128xf32, #tpu.memory_space<vmem>>) attributes {dimension_semantics = [#tpu.dimension_semantics<parallel>], iteration_bounds = array<i64: 2>, scalar_prefetch = 0 : i64, scratch_operands = 0 : i64, tpu.core_type = #tpu.core_type<tc>, window_params = [{transform_indices = @transform_0, window_bounds = array<i64: 16>}, {transform_indices = @transform_1, window_bounds = array<i64: 6, 128>}, {transform_indices = @transform_2, window_bounds = array<i64: 2, 128>}, {transform_indices = @transform_3, window_bounds = array<i64: 1, 128>}]} {
    %c0 = arith.constant 0 : index
    %c0_0 = arith.constant 0 : index
    %0 = vector.load %arg2[%c0, %c0_0] : memref<6x128xf32, #tpu.memory_space<vmem>>, vector<6x128xf32>
    %1 = vector.extract_strided_slice %0 {offsets = [0, 0], sizes = [1, 128], strides = [1, 1]} : vector<6x128xf32> to vector<1x128xf32>
    %2 = vector.extract_strided_slice %0 {offsets = [1, 0], sizes = [1, 128], strides = [1, 1]} : vector<6x128xf32> to vector<1x128xf32>
    %3 = vector.extract_strided_slice %0 {offsets = [2, 0], sizes = [1, 128], strides = [1, 1]} : vector<6x128xf32> to vector<1x128xf32>
    %4 = vector.extract_strided_slice %0 {offsets = [3, 0], sizes = [1, 128], strides = [1, 1]} : vector<6x128xf32> to vector<1x128xf32>
    %5 = vector.extract_strided_slice %0 {offsets = [4, 0], sizes = [1, 128], strides = [1, 1]} : vector<6x128xf32> to vector<1x128xf32>
    %6 = vector.extract_strided_slice %0 {offsets = [5, 0], sizes = [1, 128], strides = [1, 1]} : vector<6x128xf32> to vector<1x128xf32>
    %c0_1 = arith.constant 0 : index
    %7 = memref.load %arg1[%c0_1] : memref<16xf32, #tpu.memory_space<smem>>
    %8 = vector.broadcast %7 : f32 to vector<1x128xf32>
    %9 = arith.mulf %8, %1 : vector<1x128xf32>
    %c1 = arith.constant 1 : index
    %10 = memref.load %arg1[%c1] : memref<16xf32, #tpu.memory_space<smem>>
    %11 = vector.broadcast %10 : f32 to vector<1x128xf32>
    %12 = arith.mulf %11, %2 : vector<1x128xf32>
    %13 = arith.addf %9, %12 : vector<1x128xf32>
    %c2 = arith.constant 2 : index
    %14 = memref.load %arg1[%c2] : memref<16xf32, #tpu.memory_space<smem>>
    %15 = vector.broadcast %14 : f32 to vector<1x128xf32>
    %16 = arith.mulf %15, %3 : vector<1x128xf32>
    %17 = arith.addf %13, %16 : vector<1x128xf32>
    %c3 = arith.constant 3 : index
    %18 = memref.load %arg1[%c3] : memref<16xf32, #tpu.memory_space<smem>>
    %19 = vector.broadcast %18 : f32 to vector<1x128xf32>
    %20 = arith.mulf %19, %4 : vector<1x128xf32>
    %21 = arith.addf %17, %20 : vector<1x128xf32>
    %c4 = arith.constant 4 : index
    %22 = memref.load %arg1[%c4] : memref<16xf32, #tpu.memory_space<smem>>
    %23 = vector.broadcast %22 : f32 to vector<1x128xf32>
    %24 = arith.mulf %23, %5 : vector<1x128xf32>
    %25 = arith.addf %21, %24 : vector<1x128xf32>
    %c5 = arith.constant 5 : index
    %26 = memref.load %arg1[%c5] : memref<16xf32, #tpu.memory_space<smem>>
    %27 = vector.broadcast %26 : f32 to vector<1x128xf32>
    %28 = arith.mulf %27, %6 : vector<1x128xf32>
    %29 = arith.addf %25, %28 : vector<1x128xf32>
    %c12 = arith.constant 12 : index
    %30 = memref.load %arg1[%c12] : memref<16xf32, #tpu.memory_space<smem>>
    %31 = vector.broadcast %30 : f32 to vector<1x128xf32>
    %32 = arith.addf %29, %31 : vector<1x128xf32>
    %c6 = arith.constant 6 : index
    %33 = memref.load %arg1[%c6] : memref<16xf32, #tpu.memory_space<smem>>
    %34 = vector.broadcast %33 : f32 to vector<1x128xf32>
    %35 = arith.mulf %34, %1 : vector<1x128xf32>
    %c7 = arith.constant 7 : index
    %36 = memref.load %arg1[%c7] : memref<16xf32, #tpu.memory_space<smem>>
    %37 = vector.broadcast %36 : f32 to vector<1x128xf32>
    %38 = arith.mulf %37, %2 : vector<1x128xf32>
    %39 = arith.addf %35, %38 : vector<1x128xf32>
    %c8 = arith.constant 8 : index
    %40 = memref.load %arg1[%c8] : memref<16xf32, #tpu.memory_space<smem>>
    %41 = vector.broadcast %40 : f32 to vector<1x128xf32>
    %42 = arith.mulf %41, %3 : vector<1x128xf32>
    %43 = arith.addf %39, %42 : vector<1x128xf32>
    %c9 = arith.constant 9 : index
    %44 = memref.load %arg1[%c9] : memref<16xf32, #tpu.memory_space<smem>>
    %45 = vector.broadcast %44 : f32 to vector<1x128xf32>
    %46 = arith.mulf %45, %4 : vector<1x128xf32>
    %47 = arith.addf %43, %46 : vector<1x128xf32>
    %c10 = arith.constant 10 : index
    %48 = memref.load %arg1[%c10] : memref<16xf32, #tpu.memory_space<smem>>
    %49 = vector.broadcast %48 : f32 to vector<1x128xf32>
    %50 = arith.mulf %49, %5 : vector<1x128xf32>
    %51 = arith.addf %47, %50 : vector<1x128xf32>
    %c11 = arith.constant 11 : index
    %52 = memref.load %arg1[%c11] : memref<16xf32, #tpu.memory_space<smem>>
    %53 = vector.broadcast %52 : f32 to vector<1x128xf32>
    %54 = arith.mulf %53, %6 : vector<1x128xf32>
    %55 = arith.addf %51, %54 : vector<1x128xf32>
    %c13 = arith.constant 13 : index
    %56 = memref.load %arg1[%c13] : memref<16xf32, #tpu.memory_space<smem>>
    %57 = vector.broadcast %56 : f32 to vector<1x128xf32>
    %58 = arith.addf %55, %57 : vector<1x128xf32>
    %c14 = arith.constant 14 : index
    %59 = memref.load %arg1[%c14] : memref<16xf32, #tpu.memory_space<smem>>
    %c15 = arith.constant 15 : index
    %60 = memref.load %arg1[%c15] : memref<16xf32, #tpu.memory_space<smem>>
    %61 = arith.subf %1, %32 : vector<1x128xf32>
    %62 = arith.subf %2, %58 : vector<1x128xf32>
    %63 = arith.subf %3, %32 : vector<1x128xf32>
    %64 = arith.subf %4, %58 : vector<1x128xf32>
    %65 = arith.subf %5, %32 : vector<1x128xf32>
    %66 = arith.subf %6, %58 : vector<1x128xf32>
    %67 = vector.broadcast %59 : f32 to vector<1x128xf32>
    %68 = arith.mulf %67, %61 : vector<1x128xf32>
    %69 = arith.mulf %68, %61 : vector<1x128xf32>
    %70 = vector.broadcast %60 : f32 to vector<1x128xf32>
    %71 = arith.mulf %70, %62 : vector<1x128xf32>
    %72 = arith.mulf %71, %62 : vector<1x128xf32>
    %73 = arith.addf %69, %72 : vector<1x128xf32>
    %74 = vector.broadcast %59 : f32 to vector<1x128xf32>
    %75 = arith.mulf %74, %63 : vector<1x128xf32>
    %76 = arith.mulf %75, %63 : vector<1x128xf32>
    %77 = vector.broadcast %60 : f32 to vector<1x128xf32>
    %78 = arith.mulf %77, %64 : vector<1x128xf32>
    %79 = arith.mulf %78, %64 : vector<1x128xf32>
    %80 = arith.addf %76, %79 : vector<1x128xf32>
    %81 = vector.broadcast %59 : f32 to vector<1x128xf32>
    %82 = arith.mulf %81, %65 : vector<1x128xf32>
    %83 = arith.mulf %82, %65 : vector<1x128xf32>
    %84 = vector.broadcast %60 : f32 to vector<1x128xf32>
    %85 = arith.mulf %84, %66 : vector<1x128xf32>
    %86 = arith.mulf %85, %66 : vector<1x128xf32>
    %87 = arith.addf %83, %86 : vector<1x128xf32>
    %88 = math.sqrt %73 : vector<1x128xf32>
    %89 = math.sqrt %80 : vector<1x128xf32>
    %90 = math.sqrt %87 : vector<1x128xf32>
    %91 = arith.addf %88, %89 : vector<1x128xf32>
    %92 = arith.addf %91, %90 : vector<1x128xf32>
    %cst = arith.constant 0.333333343 : f32
    %93 = vector.broadcast %cst : f32 to vector<1x128xf32>
    %94 = arith.mulf %92, %93 : vector<1x128xf32>
    %95 = arith.subf %88, %94 : vector<1x128xf32>
    %96 = arith.subf %89, %94 : vector<1x128xf32>
    %97 = arith.subf %90, %94 : vector<1x128xf32>
    %98 = arith.mulf %95, %95 : vector<1x128xf32>
    %99 = arith.mulf %96, %96 : vector<1x128xf32>
    %100 = arith.addf %98, %99 : vector<1x128xf32>
    %101 = arith.mulf %97, %97 : vector<1x128xf32>
    %102 = arith.addf %100, %101 : vector<1x128xf32>
    %cst_2 = arith.constant 5.000000e-01 : f32
    %103 = vector.broadcast %cst_2 : f32 to vector<1x128xf32>
    %104 = arith.mulf %102, %103 : vector<1x128xf32>
    %105 = math.sqrt %104 : vector<1x128xf32>
    %c0_3 = arith.constant 0 : index
    %c0_4 = arith.constant 0 : index
    %106 = vector.load %arg4[%c0_3, %c0_4] : memref<1x128xf32, #tpu.memory_space<vmem>>, vector<1x128xf32>
    tpu.vector_store %arg4[%c0_3, %c0_4], %105 {strides = array<i32>} : memref<1x128xf32, #tpu.memory_space<vmem>>, vector<1x128xf32>,
    %107 = tpu.concatenate %32, %58 in 0 : vector<1x128xf32>, vector<1x128xf32> -> vector<2x128xf32>
    %c0_5 = arith.constant 0 : index
    %c0_6 = arith.constant 0 : index
    %108 = vector.load %arg3[%c0_5, %c0_6] : memref<2x128xf32, #tpu.memory_space<vmem>>, vector<2x128xf32>
    tpu.vector_store %arg3[%c0_5, %c0_6], %107 {strides = array<i32>} : memref<2x128xf32, #tpu.memory_space<vmem>>, vector<2x128xf32>,
    return
  }
  func.func @transform_0(%arg0: i32) -> i32 {
    %c0_i32 = arith.constant 0 : i32
    %c0_i32_0 = arith.constant 0 : i32
    return %c0_i32 : i32
  }
  func.func @transform_1(%arg0: i32) -> (i32, i32) {
    %c0_i32 = arith.constant 0 : i32
    %c0_i32_0 = arith.constant 0 : i32
    return %c0_i32, %arg0 : i32, i32
  }
  func.func @transform_2(%arg0: i32) -> (i32, i32) {
    %c0_i32 = arith.constant 0 : i32
    %c0_i32_0 = arith.constant 0 : i32
    return %c0_i32, %arg0 : i32, i32
  }
  func.func @transform_3(%arg0: i32) -> (i32, i32) {
    %c0_i32 = arith.constant 0 : i32
    %c0_i32_0 = arith.constant 0 : i32
    return %c0_i32, %arg0 : i32, i32
  }
}

</mosaic_0001>

<llo_original>
// kernel: tpu_custom_call.1
$region0: #{tpu_custom_call.1}
  #allocation0 [shape = 'u32[]', space=smem, size = 0x4, offset = 0x4, fixed_abs, tag = 'smem constant byte address 0x4 - core index']
  #allocation1 [shape = 'u32[144,128]{1,0:T(1,128)}', space=vmem, size = 0x12000, scoped, tag = 'internal scratch']
  %s0 = inlined_call_operand.hbm [shape: f32[16], index: 0, kind: input, shape index: {}]
  %s1 = inlined_call_operand.hbm [shape: f32[6,256], index: 1, kind: input, shape index: {}]
  %s2 = inlined_call_operand.hbm [shape: f32[2,256], index: 2, kind: output, shape index: {0}]
  %s3 = inlined_call_operand.hbm [shape: f32[1,256], index: 3, kind: output, shape index: {1}]
  %4 = xla_tuple %s2, %s3
  %s5 = sld [smem:[#allocation0]]
  $region57: #{tpu_custom_call.1} parent=0
    _
  %s7 = ssub.s32 1, %s5
  %s8 = scalar_select 0, %s7, %s5
  $region1: #{tpu_custom_call.1} parent=0
    #allocation2 [shape = 'u8[512]{0}', space=smem, size = 0x200, scoped, tag = 'input window, operand 0, single buffered']
    #allocation3 [shape = 's32[2]{0}', space=sflag, size = 0x8, scoped, tag = 'scoped memory for tpu_custom_call.1']
    #allocation4 [shape = 's32[2]{0}', space=sflag, size = 0x8, scoped, tag = 'scoped memory for tpu_custom_call.1']
    #allocation5 [shape = 's32[2]{0}', space=sflag, size = 0x8, scoped, tag = 'scoped memory for tpu_custom_call.1']
    #allocation6 [shape = 'u8[8192]{0}', space=vmem, size = 0x2000, scoped, tag = 'input window, operand 1']
    #allocation7 [shape = 'u8[2048]{0}', space=vmem, size = 0x800, scoped, tag = 'output window, operand 0']
    #allocation8 [shape = 'u8[1024]{0}', space=vmem, size = 0x400, scoped, tag = 'output window, operand 1']
    #allocation9 [shape = 's32[2]{0}', space=sflag, size = 0x8, scoped, tag = 'scoped memory for tpu_custom_call.1']
    %9 = vsyncpa [#allocation5], 0
    %10 = vsyncpa [#allocation3], 0
    %s11 = scalar_lea.sflag [#allocation3], 1
    %12 = vsyncpa %s11, 0
    %13 = vsyncpa [#allocation4], 0
    %s14 = scalar_lea.sflag [#allocation4], 1
    %15 = vsyncpa %s14, 0
    %16 = vsyncpa [#allocation9], 0
    %s17 = scalar_lea.sflag [#allocation9], 1
    %18 = vsyncpa %s17, 0
    loop: start=0, step=1, limit=4
    $region2: #{tpu_custom_call.1} parent=1 // loop_pre_header
      _
    $region3: #{tpu_custom_call.1} parent=1 // loop_header
      %s20 = sphi 0, %s24
      %p21 = scmp.ge.s32.totalorder %s20, 4
      %s28 = sphi 0, %s28
      %s30 = sphi 0, %s28
      %s31 = sphi 0, %s30
      %s45 = sphi 0, %s31
      %s51 = sphi 0, %s53
      %s54 = sphi 0, %s51
      %s55 = sphi 0, %s54
      %s71 = sphi 0, %s55
      %s77 = sphi 0, %s79
      %s80 = sphi 0, %s77
      %s81 = sphi 0, %s80
      %s97 = sphi 0, %s81
      %s103 = sphi 0, %s105
      %s106 = sphi 0, %s103
      %s107 = sphi 0, %s106
      %s123 = sphi 0, %s107
    $region4: #{tpu_custom_call.1} parent=1 // loop_header_branch
      %23 = sbr.rel (%p21) target = $region8
    $region5: #{tpu_custom_call.1} parent=1 // loop_body
      %s25 = ssub.s32 %s20, 1
      %s26 = ssub.s32 %s20, 2
      %s27 = sadd.s32 %s20, 1
      %s29 = sadd.s32 %s28, 1
      %p32 = scmp.eq.s32.totalorder %s20, 1
      %p33 = scmp.ne.s32.totalorder %s28, %s30
      %p34 = scmp.eq.s32.totalorder %s20, 0
      %p35 = por %p33, %p34
      %p36 = scmp.ne.s32.totalorder %s28, %s30
      %p37 = scmp.eq.s32.totalorder %s25, 1
      %p38 = por %p36, %p37
      %p39 = scmp.ne.s32.totalorder %s30, %s31
      %p40 = scmp.eq.s32.totalorder %s25, 0
      %p41 = por %p39, %p40
      %p42 = scmp.ne.s32.totalorder %s30, %s31
      %p43 = scmp.eq.s32.totalorder %s26, 1
      %p44 = por %p42, %p43
      %p46 = scmp.ne.s32.totalorder %s31, %s45
      %p47 = scmp.eq.s32.totalorder %s26, 0
      %p48 = por %p46, %p47
      %s49 = ssub.s32 %s20, %s27
      %p50 = scmp.eq.s32.totalorder %s49, 0
      %s52 = sadd.s32 %s51, 1
      %s53 = scalar_select %p50, %s51, %s52
      %p56 = pneg %p50
      %p57 = scmp.eq.s32.totalorder %s20, 1
      %p58 = por %p56, %p57
      %p59 = scmp.ne.s32.totalorder %s51, %s54
      %p60 = scmp.eq.s32.totalorder %s20, 0
      %p61 = por %p59, %p60
      %p62 = scmp.ne.s32.totalorder %s51, %s54
      %p63 = scmp.eq.s32.totalorder %s25, 1
      %p64 = por %p62, %p63
      %p65 = scmp.ne.s32.totalorder %s54, %s55
      %p66 = scmp.eq.s32.totalorder %s25, 0
      %p67 = por %p65, %p66
      %p68 = scmp.ne.s32.totalorder %s54, %s55
      %p69 = scmp.eq.s32.totalorder %s26, 1
      %p70 = por %p68, %p69
      %p72 = scmp.ne.s32.totalorder %s55, %s71
      %p73 = scmp.eq.s32.totalorder %s26, 0
      %p74 = por %p72, %p73
      %s75 = ssub.s32 %s20, %s27
      %p76 = scmp.eq.s32.totalorder %s75, 0
      %s78 = sadd.s32 %s77, 1
      %s79 = scalar_select %p76, %s77, %s78
      %p82 = pneg %p76
      %p83 = scmp.eq.s32.totalorder %s20, 1
      %p84 = por %p82, %p83
      %p85 = scmp.ne.s32.totalorder %s77, %s80
      %p86 = scmp.eq.s32.totalorder %s20, 0
      %p87 = por %p85, %p86
      %p88 = scmp.ne.s32.totalorder %s77, %s80
      %p89 = scmp.eq.s32.totalorder %s25, 1
      %p90 = por %p88, %p89
      %p91 = scmp.ne.s32.totalorder %s80, %s81
      %p92 = scmp.eq.s32.totalorder %s25, 0
      %p93 = por %p91, %p92
      %p94 = scmp.ne.s32.totalorder %s80, %s81
      %p95 = scmp.eq.s32.totalorder %s26, 1
      %p96 = por %p94, %p95
      %p98 = scmp.ne.s32.totalorder %s81, %s97
      %p99 = scmp.eq.s32.totalorder %s26, 0
      %p100 = por %p98, %p99
      %s101 = ssub.s32 %s20, %s27
      %p102 = scmp.eq.s32.totalorder %s101, 0
      %s104 = sadd.s32 %s103, 1
      %s105 = scalar_select %p102, %s103, %s104
      %p108 = pneg %p102
      %p109 = scmp.eq.s32.totalorder %s20, 1
      %p110 = por %p108, %p109
      %p111 = scmp.ne.s32.totalorder %s103, %s106
      %p112 = scmp.eq.s32.totalorder %s20, 0
      %p113 = por %p111, %p112
      %p114 = scmp.ne.s32.totalorder %s103, %s106
      %p115 = scmp.eq.s32.totalorder %s25, 1
      %p116 = por %p114, %p115
      %p117 = scmp.ne.s32.totalorder %s106, %s107
      %p118 = scmp.eq.s32.totalorder %s25, 0
      %p119 = por %p117, %p118
      %p120 = scmp.ne.s32.totalorder %s106, %s107
      %p121 = scmp.eq.s32.totalorder %s26, 1
      %p122 = por %p120, %p121
      %p124 = scmp.ne.s32.totalorder %s107, %s123
      %p125 = scmp.eq.s32.totalorder %s26, 0
      %p126 = por %p124, %p125
      %p127 = scmp.le.s32.totalorder 1, %s20
      %p128 = scmp.lt.s32.totalorder %s20, 3
      %p129 = pnand %p127, %p128
      %p130 = pneg %p129
      // Predicated region
      $region9: #{tpu_custom_call.1} parent=5 // pred_check
        _
      $region10: #{tpu_custom_call.1} parent=5 // pred_check_branch
        %132 = sbr.rel (%p129) target = $region12
      $region11: #{tpu_custom_call.1} parent=5 // pred_region
        %s133 = ssub.s32 %s20, 1
        // Predicated region
        $region13: #{tpu_custom_call.1} parent=11 // pred_check
          %p134 = pneg %p41
        $region14: #{tpu_custom_call.1} parent=11 // pred_check_branch
          %136 = sbr.rel (%p134) target = $region16
        $region15: #{tpu_custom_call.1} parent=11 // pred_region
          %s138 = ssub.s32 16, 16
          %139 = vsyncadd [#allocation5], %s138
          %142 = dma.hbm_to_smem %s0, 16, [#allocation2], [#allocation5]
        $region16: #{tpu_custom_call.1} parent=11 // pred_fallthru
          _
      $region12: #{tpu_custom_call.1} parent=5 // pred_fallthru
        _
      %p143 = scmp.lt.s32.totalorder %s20, 2
      // Predicated region
      $region17: #{tpu_custom_call.1} parent=5 // pred_check
        %p144 = pneg %p143
      $region18: #{tpu_custom_call.1} parent=5 // pred_check_branch
        %146 = sbr.rel (%p144) target = $region20
      $region19: #{tpu_custom_call.1} parent=5 // pred_region
        // Predicated region
        $region21: #{tpu_custom_call.1} parent=19 // pred_check
          %p147 = pneg %p61
        $region22: #{tpu_custom_call.1} parent=19 // pred_check_branch
          %149 = sbr.rel (%p147) target = $region24
        $region23: #{tpu_custom_call.1} parent=19 // pred_region
          %s150 = sand.u32 %s51, 1
          %s151 = scalar_lea.sflag [#allocation3], %s150
          %s152 = sand.u32 %s51, 1
          %s153 = smul.addr %s152, 8
          %s154 = scalar_lea.vmem [#allocation6], %s153
          %s156 = ssub.s32 128, 128
          %157 = vsyncadd %s151, %s156
          %s158 = smul.addr %s20, 128
          %s159 = scalar_lea.hbm %s1, %s158
          %s161 = sshll.u32 %s154, 4
          %s162 = int_to_ptr.vmem [resolvable:$true] %s161
          %164 = dma.hbm_to_vmem [thread:$0]  %s159, 128, %s162, %s151
        $region24: #{tpu_custom_call.1} parent=19 // pred_fallthru
          _
      $region20: #{tpu_custom_call.1} parent=5 // pred_fallthru
        _
      %p165 = scmp.le.s32.totalorder 1, %s20
      %p166 = scmp.lt.s32.totalorder %s20, 3
      %p167 = pnand %p165, %p166
      %p168 = pneg %p167
      // Predicated region
      $region25: #{tpu_custom_call.1} parent=5 // pred_check
        _
      $region26: #{tpu_custom_call.1} parent=5 // pred_check_branch
        %170 = sbr.rel (%p167) target = $region28
      $region27: #{tpu_custom_call.1} parent=5 // pred_region
        %s171 = ssub.s32 %s20, 1
        // Predicated region
        $region29: #{tpu_custom_call.1} parent=27 // pred_check
          %p172 = pneg %p41
        $region30: #{tpu_custom_call.1} parent=27 // pred_check_branch
          %174 = sbr.rel (%p172) target = $region32
        $region31: #{tpu_custom_call.1} parent=27 // pred_region
          %175 = dma.done [#allocation5], 16
        $region32: #{tpu_custom_call.1} parent=27 // pred_fallthru
          _
        %s176 = sand.u32 %s54, 1
        %s177 = scalar_lea.sflag [#allocation3], %s176
        %s178 = sand.u32 %s54, 1
        %s179 = smul.addr %s178, 8
        %s180 = scalar_lea.vmem [#allocation6], %s179
        // Predicated region
        $region33: #{tpu_custom_call.1} parent=27 // pred_check
          %p181 = pneg %p67
        $region34: #{tpu_custom_call.1} parent=27 // pred_check_branch
          %183 = sbr.rel (%p181) target = $region36
        $region35: #{tpu_custom_call.1} parent=27 // pred_region
          %184 = dma.done %s177, 128
        $region36: #{tpu_custom_call.1} parent=27 // pred_fallthru
          _
        %185 = sfence
        %p186 = pneg %p41
        %p187 = pneg %p38
        %s188 = sand.u32 %s54, 1
        %s189 = scalar_lea.sflag [#allocation3], %s188
        %s190 = sand.u32 %s54, 1
        %s191 = smul.addr %s190, 8
        %s192 = scalar_lea.vmem [#allocation6], %s191
        %p193 = pneg %p67
        %p194 = pneg %p64
        %p195 = pneg %p93
        %p196 = pneg %p90
        %s197 = sand.u32 %s80, 1
        %s198 = scalar_lea.sflag [#allocation4], %s197
        %s199 = sand.u32 %s80, 1
        %s200 = smul.addr %s199, 2
        %s201 = scalar_lea.vmem [#allocation7], %s200
        %p202 = pneg %p119
        %p203 = pneg %p116
        %s204 = sand.u32 %s106, 1
        %s205 = scalar_lea.sflag [#allocation9], %s204
        %s206 = sand.u32 %s106, 1
        %s207 = scalar_lea.vmem [#allocation8], %s206
        %v208 = vld [vmem:[%s180] sm:$0x3f]
        %s209 = sld [smem:[#allocation2]]
        %v210 = vstv %s209
        %v211 = vmul.f32 %v210, %v208
        %s212 = sld [smem:[#allocation2 + $0x1]]
        %v213 = vstv %s212
        %v214 = vmul.f32 %v213, %v208
        %v216 = vrot.slane %v214, 1
        %v218 = vadd.f32 %v211, %v216
        %s219 = sld [smem:[#allocation2 + $0x2]]
        %v220 = vstv %s219
        %v221 = vmul.f32 %v220, %v208
        %v223 = vrot.slane %v221, 2
        %v225 = vadd.f32 %v218, %v223
        %s226 = sld [smem:[#allocation2 + $0x3]]
        %v227 = vstv %s226
        %v228 = vmul.f32 %v227, %v208
        %v230 = vrot.slane %v228, 3
        %v232 = vadd.f32 %v225, %v230
        %s233 = sld [smem:[#allocation2 + $0x4]]
        %v234 = vstv %s233
        %v235 = vmul.f32 %v234, %v208
        %v237 = vrot.slane %v235, 4
        %v239 = vadd.f32 %v232, %v237
        %s240 = sld [smem:[#allocation2 + $0x5]]
        %v241 = vstv %s240
        %v242 = vmul.f32 %v241, %v208
        %v244 = vrot.slane %v242, 5
        %v246 = vadd.f32 %v239, %v244
        %s247 = sld [smem:[#allocation2 + $0xc]]
        %v248 = vstv %s247
        %v249 = vadd.f32 %v246, %v248
        %s250 = sld [smem:[#allocation2 + $0x6]]
        %v251 = vstv %s250
        %v252 = vmul.f32 %v251, %v208
        %s253 = sld [smem:[#allocation2 + $0x7]]
        %v254 = vstv %s253
        %v255 = vmul.f32 %v254, %v208
        %v257 = vrot.slane %v255, 1
        %v259 = vadd.f32 %v252, %v257
        %s260 = sld [smem:[#allocation2 + $0x8]]
        %v261 = vstv %s260
        %v262 = vmul.f32 %v261, %v208
        %v264 = vrot.slane %v262, 2
        %v266 = vadd.f32 %v259, %v264
        %s267 = sld [smem:[#allocation2 + $0x9]]
        %v268 = vstv %s267
        %v269 = vmul.f32 %v268, %v208
        %v271 = vrot.slane %v269, 3
        %v273 = vadd.f32 %v266, %v271
        %s274 = sld [smem:[#allocation2 + $0xa]]
        %v275 = vstv %s274
        %v276 = vmul.f32 %v275, %v208
        %v278 = vrot.slane %v276, 4
        %v280 = vadd.f32 %v273, %v278
        %s281 = sld [smem:[#allocation2 + $0xb]]
        %v282 = vstv %s281
        %v283 = vmul.f32 %v282, %v208
        %v285 = vrot.slane %v283, 5
        %v287 = vadd.f32 %v280, %v285
        %s288 = sld [smem:[#allocation2 + $0xd]]
        %v289 = vstv %s288
        %v290 = vadd.f32 %v287, %v289
        %s291 = sld [smem:[#allocation2 + $0xe]]
        %s292 = sld [smem:[#allocation2 + $0xf]]
        %v293 = vsub.f32 %v208, %v249
        %v295 = vrot.slane %v290, 7
        %v297 = vsub.f32 %v208, %v295
        %v299 = vrot.slane %v249, 6
        %v301 = vsub.f32 %v208, %v299
        %v302 = vrot.slane %v290, 5
        %v304 = vsub.f32 %v208, %v302
        %v305 = vrot.slane %v249, 4
        %v307 = vsub.f32 %v208, %v305
        %v308 = vrot.slane %v290, 3
        %v310 = vsub.f32 %v208, %v308
        %v311 = vstv %s291
        %v312 = vmul.f32 %v311, %v293
        %v313 = vmul.f32 %v312, %v293
        %v314 = vstv %s292
        %v315 = vmul.f32 %v314, %v297
        %v316 = vmul.f32 %v315, %v297
        %v318 = vrot.slane %v316, 1
        %v320 = vadd.f32 %v313, %v318
        %v321 = vmul.f32 %v311, %v301
        %v322 = vmul.f32 %v321, %v301
        %v323 = vmul.f32 %v314, %v304
        %v324 = vmul.f32 %v323, %v304
        %v326 = vrot.slane %v324, 1
        %v328 = vadd.f32 %v322, %v326
        %v329 = vmul.f32 %v311, %v307
        %v330 = vmul.f32 %v329, %v307
        %v331 = vmul.f32 %v314, %v310
        %v332 = vmul.f32 %v331, %v310
        %v334 = vrot.slane %v332, 1
        %v336 = vadd.f32 %v330, %v334
        %v337 = vrsqrt.pop %v320
        %v338 = vmul.f32 %v320, %v337
        %vm339 = vcmp.eq.f32.partialorder %v320, inf
        %v340 = vsel %vm339, %v320, %v338
        %vm341 = vcmp.eq.f32.partialorder %v320, 0.0
        %v342 = vand.u32 %v320, 2147483648
        %v343 = vsel %vm341, %v342, %v340
        %v344 = vrsqrt.pop %v328
        %v345 = vmul.f32 %v328, %v344
        %vm346 = vcmp.eq.f32.partialorder %v328, inf
        %v347 = vsel %vm346, %v328, %v345
        %vm348 = vcmp.eq.f32.partialorder %v328, 0.0
        %v349 = vand.u32 %v328, 2147483648
        %v350 = vsel %vm348, %v349, %v347
        %v351 = vrsqrt.pop %v336
        %v352 = vmul.f32 %v336, %v351
        %vm353 = vcmp.eq.f32.partialorder %v336, inf
        %v354 = vsel %vm353, %v336, %v352
        %vm355 = vcmp.eq.f32.partialorder %v336, 0.0
        %v356 = vand.u32 %v336, 2147483648
        %v357 = vsel %vm355, %v356, %v354
        %v359 = vrot.slane %v350, 2
        %v361 = vadd.f32 %v343, %v359
        %v363 = vrot.slane %v357, 4
        %v365 = vadd.f32 %v361, %v363
        %v366 = vmul.f32 %v365, 0.33333334
        %v367 = vsub.f32 %v343, %v366
        %v369 = vrot.slane %v366, 6
        %v371 = vsub.f32 %v350, %v369
        %v372 = vrot.slane %v366, 4
        %v374 = vsub.f32 %v357, %v372
        %v375 = vmul.f32 %v367, %v367
        %v376 = vmul.f32 %v371, %v371
        %v378 = vrot.slane %v376, 2
        %v380 = vadd.f32 %v375, %v378
        %v381 = vmul.f32 %v374, %v374
        %v383 = vrot.slane %v381, 4
        %v385 = vadd.f32 %v380, %v383
        %v386 = vmul.f32 %v385, 0.5
        %v387 = vrsqrt.pop %v386
        %v388 = vmul.f32 %v386, %v387
        %vm389 = vcmp.eq.f32.partialorder %v386, inf
        %v390 = vsel %vm389, %v386, %v388
        %vm391 = vcmp.eq.f32.partialorder %v386, 0.0
        %v392 = vand.u32 %v386, 2147483648
        %v393 = vsel %vm391, %v392, %v390
        %394 = vst [vmem:[%s207] sm:$0x1] %v393
        %vm395 = vcmask 1040384
        %v396 = vsel %vm395, %v249, %v295
        %397 = vst [vmem:[%s201] sm:$0x3] %v396
        %s398 = sand.u32 %s80, 1
        %s399 = scalar_lea.sflag [#allocation4], %s398
        %s400 = sand.u32 %s80, 1
        %s401 = smul.addr %s400, 2
        %s402 = scalar_lea.vmem [#allocation7], %s401
        %s403 = sand.u32 %s106, 1
        %s404 = scalar_lea.sflag [#allocation9], %s403
        %s405 = sand.u32 %s106, 1
        %s406 = scalar_lea.vmem [#allocation8], %s405
        // Predicated region
        $region37: #{tpu_custom_call.1} parent=27 // pred_check
          %p407 = pneg %p90
        $region38: #{tpu_custom_call.1} parent=27 // pred_check_branch
          %409 = sbr.rel (%p407) target = $region40
        $region39: #{tpu_custom_call.1} parent=27 // pred_region
          %s411 = ssub.s32 32, 32
          %412 = vsyncadd %s399, %s411
          %s413 = smul.addr %s25, 32
          %s414 = scalar_lea.hbm %s2, %s413
          %s416 = sshll.u32 %s402, 4
          %s417 = int_to_ptr.vmem [resolvable:$true] %s416
          %419 = dma.vmem_to_hbm [thread:$0]  %s417, 32, %s414, %s399
        $region40: #{tpu_custom_call.1} parent=27 // pred_fallthru
          _
        // Predicated region
        $region41: #{tpu_custom_call.1} parent=27 // pred_check
          %p420 = pneg %p116
        $region42: #{tpu_custom_call.1} parent=27 // pred_check_branch
          %422 = sbr.rel (%p420) target = $region44
        $region43: #{tpu_custom_call.1} parent=27 // pred_region
          %s424 = ssub.s32 16, 16
          %425 = vsyncadd %s404, %s424
          %s426 = smul.addr %s25, 16
          %s427 = scalar_lea.hbm %s3, %s426
          %s429 = sshll.u32 %s406, 4
          %s430 = int_to_ptr.vmem [resolvable:$true] %s429
          %432 = dma.vmem_to_hbm [thread:$0]  %s430, 16, %s427, %s404
        $region44: #{tpu_custom_call.1} parent=27 // pred_fallthru
          _
      $region28: #{tpu_custom_call.1} parent=5 // pred_fallthru
        _
      %p433 = scmp.le.s32.totalorder 2, %s20
      // Predicated region
      $region45: #{tpu_custom_call.1} parent=5 // pred_check
        %p434 = pneg %p433
      $region46: #{tpu_custom_call.1} parent=5 // pred_check_branch
        %436 = sbr.rel (%p434) target = $region48
      $region47: #{tpu_custom_call.1} parent=5 // pred_region
        %s437 = ssub.s32 %s20, 2
        // Predicated region
        $region49: #{tpu_custom_call.1} parent=47 // pred_check
          %p438 = pneg %p96
        $region50: #{tpu_custom_call.1} parent=47 // pred_check_branch
          %440 = sbr.rel (%p438) target = $region52
        $region51: #{tpu_custom_call.1} parent=47 // pred_region
          %s441 = sand.u32 %s81, 1
          %s442 = scalar_lea.sflag [#allocation4], %s441
          %s443 = sand.u32 %s81, 1
          %s444 = smul.addr %s443, 2
          %s445 = scalar_lea.vmem [#allocation7], %s444
          %446 = dma.done %s442, 32
        $region52: #{tpu_custom_call.1} parent=47 // pred_fallthru
          _
        // Predicated region
        $region53: #{tpu_custom_call.1} parent=47 // pred_check
          %p447 = pneg %p122
        $region54: #{tpu_custom_call.1} parent=47 // pred_check_branch
          %449 = sbr.rel (%p447) target = $region56
        $region55: #{tpu_custom_call.1} parent=47 // pred_region
          %s450 = sand.u32 %s107, 1
          %s451 = scalar_lea.sflag [#allocation9], %s450
          %s452 = sand.u32 %s107, 1
          %s453 = scalar_lea.vmem [#allocation8], %s452
          %454 = dma.done %s451, 16
        $region56: #{tpu_custom_call.1} parent=47 // pred_fallthru
          _
      $region48: #{tpu_custom_call.1} parent=5 // pred_fallthru
        _
    $region6: #{tpu_custom_call.1} parent=1 // loop_footer
      %s24 = sadd.s32 1, %s20
    $region7: #{tpu_custom_call.1} parent=1 // loop_footer_branch
      %19 = sbr.rel target = $region3
    $region8: #{tpu_custom_call.1} parent=1 // loop_exit
      _
    %455 = vsyncpa [#allocation3], 1
    %s456 = scalar_lea.sflag [#allocation3], 1
    %457 = vsyncpa %s456, 1
    %458 = vsyncpa [#allocation4], 1
    %s459 = scalar_lea.sflag [#allocation4], 1
    %460 = vsyncpa %s459, 1
    %461 = vsyncpa [#allocation9], 1
    %s462 = scalar_lea.sflag [#allocation9], 1
    %463 = vsyncpa %s462, 1
    %464 = vsyncpa [#allocation5], 1
    %s465 = scalar_lea.sflag [#allocation5], 1
    %466 = vsyncpa %s465, 1

</llo_original>
